<compile_context>
chip_gen: v6e
topology: v6e:2x2x1
jax: 0.10.0
libtpu: 0.0.40
codegen_flags: <defaults>
</compile_context>

<pallas_src>
import functools
import math
from typing import NamedTuple

import jax
import jax.numpy as jnp
from jax import lax
from jax.experimental import pallas as pl
from jax.experimental.pallas import tpu as pltpu

_INV_SQRT2 = 1.0 / math.sqrt(2.0)
_SUBLANE = 16  # row-tile granularity (safe for bf16 and f32 blocks)


def _gelu_exact(x):
    # Matches torch.nn.GELU() default (erf-based, not tanh approximation).
    return 0.5 * x * (1.0 + lax.erf(x * _INV_SQRT2))


def _round_up(x, m):
    return ((x + m - 1) // m) * m


def _cdiv(a, b):
    return -(-a // b)


def _tpu_config():
    """Generation-aware defaults: (scoped-VMEM cap, lane/feature padding, default row tile)."""
    kind = ""
    try:
        kind = jax.devices()[0].device_kind.lower()
    except Exception:
        pass
    is_v5 = "v5" in kind
    is_v7 = "v7" in kind
    phys_vmem = (64 << 20) if is_v7 else (128 << 20)
    vmem_cap = int(phys_vmem * 0.85)      # leave headroom for Mosaic internal scratch
    lane_pad = 128 if is_v5 else 256      # v6e/v7x MXU is 256x256; v5e is 128x128
    default_tm = 256 if is_v7 else 512
    return vmem_cap, lane_pad, default_tm


def _vmem_budget(tm, f_in_p, f_out_p, tn, n_tiles, c_size, o_size):
    """Bytes of VMEM the kernel actually needs for one grid step."""
    w_buf = 1 if n_tiles == 1 else 2                     # w2/b2 double-buffer only if streamed
    b = f_in_p * f_out_p * c_size                        # w1 (Buffered(1), resident)
    b += f_out_p * 4                                     # b1 (f32, Buffered(1))
    b += w_buf * (f_out_p * tn * c_size + tn * 4)        # w2 / b2 panel
    b += 2 * tm * f_in_p * c_size                        # x tile, double-buffered
    b += 2 * tm * tn * o_size                            # out tile, double-buffered
    b += tm * f_out_p * c_size                           # h scratch (compute dtype)
    b += tm * f_out_p * 4 + tm * tn * 4                  # f32 accumulators / GELU temps
    return b


class AdapterConfig(NamedTuple):
    f_in: int
    f_out: int
    f_in_p: int
    f_out_p: int
    tn: int
    n_tiles: int
    default_tm: int
    vmem_cap: int
    compute_dtype: str
    out_dtype: str


def prepare_params(w1, b1, w2, b2, *, compute_dtype=jnp.bfloat16, out_dtype=jnp.bfloat16):
    """One-time weight prep (do at load time, NOT per forward): cast to the MXU compute
    dtype and zero-pad feature dims to MXU-aligned sizes; plan the F_out (N) tiling so the
    resident footprint fits this generation's VMEM.

    w1: (F_in, F_out)  [torch linear1.weight.T]; b1: (F_out,) or (1, F_out)
    w2: (F_out, F_out) [torch linear2.weight.T]; b2: (F_out,) or (1, F_out)
    """
    F_in, F_out = w1.shape
    vmem_cap, lane_pad, default_tm = _tpu_config()
    cdt = jnp.dtype(compute_dtype)
    odt = jnp.dtype(out_dtype)
    f_in_p = _round_up(F_in, lane_pad)

    tm = default_tm
    n_tiles = 1
    while True:
        tn = _round_up(_cdiv(F_out, n_tiles), lane_pad)
        f_out_p = tn * n_tiles
        if _vmem_budget(tm, f_in_p, f_out_p, tn, n_tiles, cdt.itemsize, odt.itemsize) <= vmem_cap:
            break
        if tn > lane_pad:
            n_tiles += 1          # shrink the w2 / output column panel first
        elif tm > 64:
            tm //= 2              # then shrink the row tile
        else:
            break                 # give up shrinking; compiler may still manage

    cfg = AdapterConfig(F_in, F_out, f_in_p, f_out_p, tn, n_tiles, tm, vmem_cap,
                        cdt.name, odt.name)

    w1p = jnp.pad(w1.astype(cdt), ((0, f_in_p - F_in), (0, f_out_p - F_out)))
    w2p = jnp.pad(w2.astype(cdt), ((0, f_out_p - F_out), (0, f_out_p - F_out)))
    b1p = jnp.pad(jnp.reshape(b1, (1, -1)).astype(jnp.float32), ((0, 0), (0, f_out_p - F_out)))
    b2p = jnp.pad(jnp.reshape(b2, (1, -1)).astype(jnp.float32), ((0, 0), (0, f_out_p - F_out)))
    return (w1p, b1p, w2p, b2p), cfg


def image_adapter_kernel(x_ref, w1_ref, b1_ref, w2_ref, b2_ref, o_ref, h_ref):
    j = pl.program_id(1)

    # linear1 + bias + GELU computed ONCE per row tile (not per N panel); result cached
    # in a VMEM scratch in the compute dtype and reused by every F_out panel below.
    @pl.when(j == 0)
    def _():
        h = jnp.dot(x_ref[...], w1_ref[...], preferred_element_type=jnp.float32)
        h = _gelu_exact(h + b1_ref[...])          # bias + GELU in f32
        h_ref[...] = h.astype(h_ref.dtype)

    # linear2 on the current F_out column panel (f32 accumulate, bias add in f32).
    y = jnp.dot(h_ref[...], w2_ref[...], preferred_element_type=jnp.float32)
    o_ref[...] = (y + b2_ref[...]).astype(o_ref.dtype)


@functools.partial(jax.jit, static_argnames=("cfg",))
def image_adapter(vision_outputs, params, cfg: AdapterConfig):
    """vision_outputs: (B, S, F_in). params/cfg from prepare_params(). Returns (B, S, F_out)."""
    w1p, b1p, w2p, b2p = params
    B, S, F_in = vision_outputs.shape
    assert F_in == cfg.f_in
    cdt = jnp.dtype(cfg.compute_dtype)
    odt = jnp.dtype(cfg.out_dtype)
    f_in_p, f_out_p, tn, n_tiles = cfg.f_in_p, cfg.f_out_p, cfg.tn, cfg.n_tiles

    M = B * S
    # Divisor-friendly row tiling: near-equal tiles (multiple of 16 sublanes) so padded
    # rows stay well below one tile even for awkward M.
    m16 = _round_up(max(M, 1), _SUBLANE)
    num_m = max(1, _cdiv(m16, cfg.default_tm))
    tm = _round_up(_cdiv(m16, num_m), _SUBLANE)
    m_p = tm * num_m

    x2 = vision_outputs.reshape(M, F_in).astype(cdt)
    x2 = jnp.pad(x2, ((0, m_p - M), (0, f_in_p - F_in)))

    resident = pl.Buffered(1)                                    # weights fetched once
    panel = pl.Buffered(1) if n_tiles == 1 else pl.Buffered(2)   # stream w2 panels if tiled

    vmem_bytes = int(min(cfg.vmem_cap,
                         max(8 << 20,
                             int(1.25 * _vmem_budget(tm, f_in_p, f_out_p, tn, n_tiles,
                                                     cdt.itemsize, odt.itemsize)))))

    cost = pl.CostEstimate(
        flops=2 * m_p * f_out_p * (f_in_p + f_out_p),
        transcendentals=m_p * f_out_p,
        bytes_accessed=(x2.size * cdt.itemsize
                        + (w1p.size + w2p.size) * cdt.itemsize
                        + (b1p.size + b2p.size) * 4
                        + m_p * f_out_p * odt.itemsize),
    )

    out = pl.pallas_call(
        image_adapter_kernel,
        out_shape=jax.ShapeDtypeStruct((m_p, f_out_p), odt),
        grid=(num_m, n_tiles),
        in_specs=[
            # x: streamed row tiles (constant across j, so fetched once per row tile)
            pl.BlockSpec((tm, f_in_p), lambda i, j: (i, 0)),
            # w1 / b1: VMEM-resident, single-buffered (no re-fetch to overlap)
            pl.BlockSpec((f_in_p, f_out_p), lambda i, j: (0, 0), pipeline_mode=resident),
            pl.BlockSpec((1, f_out_p), lambda i, j: (0, 0), pipeline_mode=resident),
            # w2 / b2: F_out column panels (resident when n_tiles == 1)
            pl.BlockSpec((f_out_p, tn), lambda i, j: (0, j), pipeline_mode=panel),
            pl.BlockSpec((1, tn), lambda i, j: (0, j), pipeline_mode=panel),
        ],
        out_specs=pl.BlockSpec((tm, tn), lambda i, j: (i, j)),
        scratch_shapes=[pltpu.VMEM((tm, f_out_p), cdt)],   # cached GELU(linear1) per row tile
        compiler_params=pltpu.CompilerParams(
            dimension_semantics=("parallel", "arbitrary"),
            vmem_limit_bytes=vmem_bytes,
        ),
        cost_estimate=cost,
    )(x2, w1p, b1p, w2p, b2p)

    return out[:M, :cfg.f_out].reshape(B, S, cfg.f_out)


def init_params(key, input_features, output_features, dtype=jnp.float32):
    """Deterministic init mimicking nn.Linear's uniform(-1/sqrt(fan_in), 1/sqrt(fan_in)).
    Weights stored already transposed: (in, out)."""
    k1, k2, k3, k4 = jax.random.split(key, 4)
    bound1 = 1.0 / math.sqrt(input_features)
    bound2 = 1.0 / math.sqrt(output_features)
    w1 = jax.random.uniform(k1, (input_features, output_features), dtype,
                            minval=-bound1, maxval=bound1)
    b1 = jax.random.uniform(k2, (1, output_features), dtype,
                            minval=-bound1, maxval=bound1)
    w2 = jax.random.uniform(k3, (output_features, output_features), dtype,
                            minval=-bound2, maxval=bound2)
    b2 = jax.random.uniform(k4, (1, output_features), dtype,
                            minval=-bound2, maxval=bound2)
    return w1, b1, w2, b2


if __name__ == "__main__":
    key = jax.random.PRNGKey(0)
    k_x, k_p = jax.random.split(key)

    # Small demo shapes; F_in/F_out deliberately non-multiples of 128/256 to exercise
    # the padding / lane-dense output path.
    B, S = 2, 8
    input_features, output_features = 96, 160

    x = jax.random.normal(k_x, (B, S, input_features), jnp.float32)
    w1, b1, w2, b2 = init_params(k_p, input_features, output_features)

    # f32-output run for tight numeric checks.
    params32, cfg32 = prepare_params(w1, b1, w2, b2, out_dtype=jnp.float32)
    y = jax.block_until_ready(image_adapter(x, params32, cfg32))
    assert y.shape == (B, S, output_features)

    # Reference 1: same precision recipe as the kernel (bf16 operands, f32 accumulate).
    bf16 = jnp.bfloat16
    ref = jnp.dot(x.astype(bf16), w1.astype(bf16),
                  preferred_element_type=jnp.float32) + b1[0]
    ref = _gelu_exact(ref)
    ref = jnp.dot(ref.astype(bf16), w2.astype(bf16),
                  preferred_element_type=jnp.float32) + b2[0]
    assert jnp.allclose(y, ref, atol=2e-3, rtol=2e-3), float(jnp.max(jnp.abs(y - ref)))

    # Reference 2: full f32 math (matches the PyTorch module); loose tolerance since the
    # kernel feeds the MXU bf16 operands.
    ref32 = jnp.dot(x, w1) + b1[0]
    ref32 = _gelu_exact(ref32)
    ref32 = jnp.dot(ref32, w2) + b2[0]
    assert jnp.allclose(y, ref32, atol=5e-2, rtol=5e-2), float(jnp.max(jnp.abs(y - ref32)))

    # Default path: bf16 output (halved HBM writeback / output-tile VMEM).
    params_bf, cfg_bf = prepare_params(w1, b1, w2, b2)
    y_bf = jax.block_until_ready(image_adapter(x, params_bf, cfg_bf))
    assert y_bf.shape == (B, S, output_features) and y_bf.dtype == jnp.bfloat16
    assert jnp.allclose(y_bf.astype(jnp.float32), ref, atol=2e-2, rtol=2e-2), \
        float(jnp.max(jnp.abs(y_bf.astype(jnp.float32) - ref)))

    print("KERNEL_OK")
</pallas_src>

<mosaic_0001>
module attributes {stable_mosaic.version = 11 : i64} {
  func.func @image_adapter_kernel(%arg0: i32, %arg1: i32, %arg2: memref<16x256xbf16, #tpu.memory_space<vmem>>, %arg3: memref<256x256xbf16, #tpu.memory_space<vmem>>, %arg4: memref<1x256xf32, #tpu.memory_space<vmem>>, %arg5: memref<256x256xbf16, #tpu.memory_space<vmem>>, %arg6: memref<1x256xf32, #tpu.memory_space<vmem>>, %arg7: memref<16x256xf32, #tpu.memory_space<vmem>>, %arg8: memref<16x256xbf16, #tpu.memory_space<vmem>>) attributes {dimension_semantics = [#tpu.dimension_semantics<parallel>, #tpu.dimension_semantics<arbitrary>], iteration_bounds = array<i64: 1, 1>, scalar_prefetch = 0 : i64, scratch_operands = 1 : i64, tpu.core_type = #tpu.core_type<tc>, window_params = [{transform_indices = @transform_0, window_bounds = array<i64: 16, 256>}, {pipeline_mode = #tpu.pipeline_mode<synchronous>, transform_indices = @transform_1, window_bounds = array<i64: 256, 256>}, {pipeline_mode = #tpu.pipeline_mode<synchronous>, transform_indices = @transform_2, window_bounds = array<i64: 1, 256>}, {pipeline_mode = #tpu.pipeline_mode<synchronous>, transform_indices = @transform_3, window_bounds = array<i64: 256, 256>}, {pipeline_mode = #tpu.pipeline_mode<synchronous>, transform_indices = @transform_4, window_bounds = array<i64: 1, 256>}, {transform_indices = @transform_5, window_bounds = array<i64: 16, 256>}]} {
    %c0_i32 = arith.constant 0 : i32
    %0 = arith.cmpi eq, %arg1, %c0_i32 : i32
    %1 = arith.extui %0 : i1 to i32
    %c0_i32_0 = arith.constant 0 : i32
    %2 = arith.cmpi ne, %1, %c0_i32_0 : i32
    scf.if %2 {
      %c0_8 = arith.constant 0 : index
      %c0_9 = arith.constant 0 : index
      %10 = vector.load %arg2[%c0_8, %c0_9] : memref<16x256xbf16, #tpu.memory_space<vmem>>, vector<16x256xbf16>
      %c0_10 = arith.constant 0 : index
      %c0_11 = arith.constant 0 : index
      %11 = vector.load %arg3[%c0_10, %c0_11] : memref<256x256xbf16, #tpu.memory_space<vmem>>, vector<256x256xbf16>
      %cst_12 = arith.constant dense<0.000000e+00> : vector<16x256xf32>
      %12 = tpu.matmul %10, %11, %cst_12 {dimension_numbers = #tpu.dot_dimension_numbers<[1], [0], [0], [1], [0, 0, 1, 1], [], []>} : vector<16x256xbf16>, vector<256x256xbf16>, vector<16x256xf32> -> vector<16x256xf32>
      %c0_13 = arith.constant 0 : index
      %c0_14 = arith.constant 0 : index
      %13 = vector.load %arg4[%c0_13, %c0_14] : memref<1x256xf32, #tpu.memory_space<vmem>>, vector<1x256xf32>
      %14 = vector.broadcast %13 : vector<1x256xf32> to vector<16x256xf32>
      %15 = arith.addf %12, %14 : vector<16x256xf32>
      %cst_15 = arith.constant 5.000000e-01 : f32
      %16 = vector.broadcast %cst_15 : f32 to vector<16x256xf32>
      %17 = arith.mulf %16, %15 : vector<16x256xf32>
      %cst_16 = arith.constant 0.707106769 : f32
      %18 = vector.broadcast %cst_16 : f32 to vector<16x256xf32>
      %19 = arith.mulf %15, %18 : vector<16x256xf32>
      %20 = math.erf %19 : vector<16x256xf32>
      %cst_17 = arith.constant 1.000000e+00 : f32
      %21 = vector.broadcast %cst_17 : f32 to vector<16x256xf32>
      %22 = arith.addf %21, %20 : vector<16x256xf32>
      %23 = arith.mulf %17, %22 : vector<16x256xf32>
      %24 = arith.truncf %23 : vector<16x256xf32> to vector<16x256xbf16>
      %c0_18 = arith.constant 0 : index
      %c0_19 = arith.constant 0 : index
      %25 = vector.load %arg8[%c0_18, %c0_19] : memref<16x256xbf16, #tpu.memory_space<vmem>>, vector<16x256xbf16>
      tpu.vector_store %arg8[%c0_18, %c0_19], %24 {strides = array<i32>} : memref<16x256xbf16, #tpu.memory_space<vmem>>, vector<16x256xbf16>,
    } else {
    }
    %c0 = arith.constant 0 : index
    %c0_1 = arith.constant 0 : index
    %3 = vector.load %arg8[%c0, %c0_1] : memref<16x256xbf16, #tpu.memory_space<vmem>>, vector<16x256xbf16>
    %c0_2 = arith.constant 0 : index
    %c0_3 = arith.constant 0 : index
    %4 = vector.load %arg5[%c0_2, %c0_3] : memref<256x256xbf16, #tpu.memory_space<vmem>>, vector<256x256xbf16>
    %cst = arith.constant dense<0.000000e+00> : vector<16x256xf32>
    %5 = tpu.matmul %3, %4, %cst {dimension_numbers = #tpu.dot_dimension_numbers<[1], [0], [0], [1], [0, 0, 1, 1], [], []>} : vector<16x256xbf16>, vector<256x256xbf16>, vector<16x256xf32> -> vector<16x256xf32>
    %c0_4 = arith.constant 0 : index
    %c0_5 = arith.constant 0 : index
    %6 = vector.load %arg6[%c0_4, %c0_5] : memref<1x256xf32, #tpu.memory_space<vmem>>, vector<1x256xf32>
    %7 = vector.broadcast %6 : vector<1x256xf32> to vector<16x256xf32>
    %8 = arith.addf %5, %7 : vector<16x256xf32>
    %c0_6 = arith.constant 0 : index
    %c0_7 = arith.constant 0 : index
    %9 = vector.load %arg7[%c0_6, %c0_7] : memref<16x256xf32, #tpu.memory_space<vmem>>, vector<16x256xf32>
    tpu.vector_store %arg7[%c0_6, %c0_7], %8 {strides = array<i32>} : memref<16x256xf32, #tpu.memory_space<vmem>>, vector<16x256xf32>,
    return
  }
  func.func @transform_0(%arg0: i32, %arg1: i32) -> (i32, i32) {
    %c0_i32 = arith.constant 0 : i32
    %c0_i32_0 = arith.constant 0 : i32
    return %arg0, %c0_i32 : i32, i32
  }
  func.func @transform_1(%arg0: i32, %arg1: i32) -> (i32, i32) {
    %c0_i32 = arith.constant 0 : i32
    %c0_i32_0 = arith.constant 0 : i32
    %c0_i32_1 = arith.constant 0 : i32
    return %c0_i32, %c0_i32_0 : i32, i32
  }
  func.func @transform_2(%arg0: i32, %arg1: i32) -> (i32, i32) {
    %c0_i32 = arith.constant 0 : i32
    %c0_i32_0 = arith.constant 0 : i32
    %c0_i32_1 = arith.constant 0 : i32
    return %c0_i32, %c0_i32_0 : i32, i32
  }
  func.func @transform_3(%arg0: i32, %arg1: i32) -> (i32, i32) {
    %c0_i32 = arith.constant 0 : i32
    %c0_i32_0 = arith.constant 0 : i32
    return %c0_i32, %arg1 : i32, i32
  }
  func.func @transform_4(%arg0: i32, %arg1: i32) -> (i32, i32) {
    %c0_i32 = arith.constant 0 : i32
    %c0_i32_0 = arith.constant 0 : i32
    return %c0_i32, %arg1 : i32, i32
  }
  func.func @transform_5(%arg0: i32, %arg1: i32) -> (i32, i32) {
    %c0_i32 = arith.constant 0 : i32
    return %arg0, %arg1 : i32, i32
  }
}

</mosaic_0001>

<llo_original>
// kernel: image_adapter.1
$region0: #{image_adapter.1}
  #allocation0 [shape = 'u32[]', space=smem, size = 0x4, offset = 0x4, fixed_abs, tag = 'smem constant byte address 0x4 - core index']
  #allocation1 [shape = 'u32[144,128]{1,0:T(1,128)}', space=vmem, size = 0x12000, scoped, tag = 'internal scratch']
  #allocation2 [shape = 'bf16[16,256]{1,0:T(8,128)(2,1)}', space=vmem, size = 0x2000, scoped, tag = 'scratch operand']
  %s0 = inlined_call_operand.vmem [shape: bf16[16,256], index: 0, kind: input, shape index: {}]
  %s1 = inlined_call_operand.hbm [shape: bf16[256,256], index: 1, kind: input, shape index: {}]
  %s2 = inlined_call_operand.vmem [shape: f32[1,256], index: 2, kind: input, shape index: {}]
  %s3 = inlined_call_operand.hbm [shape: bf16[256,256], index: 3, kind: input, shape index: {}]
  %s4 = inlined_call_operand.vmem [shape: f32[1,256], index: 4, kind: input, shape index: {}]
  %s5 = inlined_call_operand.vmem [shape: f32[16,256], index: 5, kind: output, shape index: {}]
  %s6 = sld [smem:[#allocation0]]
  $region42: #{image_adapter.1} parent=0
    _
  %s8 = ssub.s32 1, %s6
  %s9 = scalar_select 0, %s8, %s6
  $region1: #{image_adapter.1} parent=0
    #allocation3 [shape = 'u8[131072]{0}', space=vmem, size = 0x20000, scoped, tag = 'input window, operand 1, single buffered']
    #allocation4 [shape = 's32[1]{0}', space=sflag, size = 0x4, scoped, tag = 'scoped memory for image_adapter.1']
    #allocation5 [shape = 'u8[131072]{0}', space=vmem, size = 0x20000, scoped, tag = 'input window, operand 3, single buffered']
    #allocation6 [shape = 's32[1]{0}', space=sflag, size = 0x4, scoped, tag = 'scoped memory for image_adapter.1']
    %10 = vsyncpa [#allocation4], 0
    %11 = vsyncpa [#allocation6], 0
    // Predicated region
    $region2: #{image_adapter.1} parent=1 // pred_check
      _
    $region3: #{image_adapter.1} parent=1 // pred_check_branch
      %13 = sbr.rel (0) target = $region5
    $region4: #{image_adapter.1} parent=1 // pred_region
      _
    $region5: #{image_adapter.1} parent=1 // pred_fallthru
      _
    // Predicated region
    $region6: #{image_adapter.1} parent=1 // pred_check
      _
    $region7: #{image_adapter.1} parent=1 // pred_check_branch
      %15 = sbr.rel (0) target = $region9
    $region8: #{image_adapter.1} parent=1 // pred_region
      %s17 = ssub.s32 4096, 4096
      %18 = vsyncadd [#allocation4], %s17
      %s19 = sshll.u32 [#allocation3], 4
      %s20 = int_to_ptr.vmem [resolvable:$true] %s19
      %25 = dma.hbm_to_vmem [thread:$0]  %s1, 4096, %s20, [#allocation4], 128, 128, 8
    $region9: #{image_adapter.1} parent=1 // pred_fallthru
      _
    // Predicated region
    $region10: #{image_adapter.1} parent=1 // pred_check
      _
    $region11: #{image_adapter.1} parent=1 // pred_check_branch
      %27 = sbr.rel (0) target = $region13
    $region12: #{image_adapter.1} parent=1 // pred_region
      _
    $region13: #{image_adapter.1} parent=1 // pred_fallthru
      _
    // Predicated region
    $region14: #{image_adapter.1} parent=1 // pred_check
      _
    $region15: #{image_adapter.1} parent=1 // pred_check_branch
      %29 = sbr.rel (0) target = $region17
    $region16: #{image_adapter.1} parent=1 // pred_region
      %s31 = ssub.s32 4096, 4096
      %32 = vsyncadd [#allocation6], %s31
      %s33 = sshll.u32 [#allocation5], 4
      %s34 = int_to_ptr.vmem [resolvable:$true] %s33
      %39 = dma.hbm_to_vmem [thread:$0]  %s3, 4096, %s34, [#allocation6], 128, 128, 8
    $region17: #{image_adapter.1} parent=1 // pred_fallthru
      _
    // Predicated region
    $region18: #{image_adapter.1} parent=1 // pred_check
      _
    $region19: #{image_adapter.1} parent=1 // pred_check_branch
      %41 = sbr.rel (0) target = $region21
    $region20: #{image_adapter.1} parent=1 // pred_region
      _
    $region21: #{image_adapter.1} parent=1 // pred_fallthru
      _
    // Predicated region
    $region22: #{image_adapter.1} parent=1 // pred_check
      _
    $region23: #{image_adapter.1} parent=1 // pred_check_branch
      %43 = sbr.rel (0) target = $region25
    $region24: #{image_adapter.1} parent=1 // pred_region
      %44 = dma.done [#allocation4], 4096
    $region25: #{image_adapter.1} parent=1 // pred_fallthru
      _
    // Predicated region
    $region26: #{image_adapter.1} parent=1 // pred_check
      _
    $region27: #{image_adapter.1} parent=1 // pred_check_branch
      %46 = sbr.rel (0) target = $region29
    $region28: #{image_adapter.1} parent=1 // pred_region
      %47 = dma.done [#allocation6], 4096
    $region29: #{image_adapter.1} parent=1 // pred_fallthru
      _
    %p48 = scmp.eq.s32.totalorder 0, 0
    // Predicated region
    $region30: #{image_adapter.1} parent=1 // pred_check
      %p49 = pneg %p48
    $region31: #{image_adapter.1} parent=1 // pred_check_branch
      %51 = sbr.rel (%p49) target = $region33
    $region32: #{image_adapter.1} parent=1 // pred_region
      %v52 = vld [vmem:[%s0] sm:$0xff]
      %v53 = vld [vmem:[%s0 + $0x8] sm:$0xff]
      %v54 = vld [vmem:[#allocation3] sm:$0xff]
      %v55 = vld [vmem:[#allocation3 + $0x8] sm:$0xff]
      %v56 = vld [vmem:[#allocation3 + $0x10] sm:$0xff]
      %v57 = vld [vmem:[#allocation3 + $0x18] sm:$0xff]
      %v58 = vld [vmem:[#allocation3 + $0x20] sm:$0xff]
      %v59 = vld [vmem:[#allocation3 + $0x28] sm:$0xff]
      %v60 = vld [vmem:[#allocation3 + $0x30] sm:$0xff]
      %v61 = vld [vmem:[#allocation3 + $0x38] sm:$0xff]
      %v62 = vld [vmem:[#allocation3 + $0x40] sm:$0xff]
      %v63 = vld [vmem:[#allocation3 + $0x48] sm:$0xff]
      %v64 = vld [vmem:[#allocation3 + $0x50] sm:$0xff]
      %v65 = vld [vmem:[#allocation3 + $0x58] sm:$0xff]
      %v66 = vld [vmem:[#allocation3 + $0x60] sm:$0xff]
      %v67 = vld [vmem:[#allocation3 + $0x68] sm:$0xff]
      %v68 = vld [vmem:[#allocation3 + $0x70] sm:$0xff]
      %v69 = vld [vmem:[#allocation3 + $0x78] sm:$0xff]
      %v70 = vld [vmem:[#allocation3 + $0x80] sm:$0xff]
      %v71 = vld [vmem:[#allocation3 + $0x88] sm:$0xff]
      %v72 = vld [vmem:[#allocation3 + $0x90] sm:$0xff]
      %v73 = vld [vmem:[#allocation3 + $0x98] sm:$0xff]
      %v74 = vld [vmem:[#allocation3 + $0xa0] sm:$0xff]
      %v75 = vld [vmem:[#allocation3 + $0xa8] sm:$0xff]
      %v76 = vld [vmem:[#allocation3 + $0xb0] sm:$0xff]
      %v77 = vld [vmem:[#allocation3 + $0xb8] sm:$0xff]
      %v78 = vld [vmem:[#allocation3 + $0xc0] sm:$0xff]
      %v79 = vld [vmem:[#allocation3 + $0xc8] sm:$0xff]
      %v80 = vld [vmem:[#allocation3 + $0xd0] sm:$0xff]
      %v81 = vld [vmem:[#allocation3 + $0xd8] sm:$0xff]
      %v82 = vld [vmem:[#allocation3 + $0xe0] sm:$0xff]
      %v83 = vld [vmem:[#allocation3 + $0xe8] sm:$0xff]
      %v84 = vld [vmem:[#allocation3 + $0xf0] sm:$0xff]
      %v85 = vld [vmem:[#allocation3 + $0xf8] sm:$0xff]
      %v86 = vld [vmem:[%s2] sm:$0x3]
      %v88 = vlaneseq
      %v89 = vshrl.u32 %v88, 7
      %v90 = vsub.s32 0, %v89
      %v91 = vrot.slane %v86, %v90
      %v92 = vlaneseq
      %v93 = vshrl.u32 %v92, 7
      %v94 = vsub.s32 1, %v93
      %v95 = vrot.slane %v86, %v94
      %v100 = vunpack.c.l.b16 %v52
      %v101 = vunpack.c.h.b16 %v52
      %v102 = vunpack.c.l.b16 %v53
      %v103 = vunpack.c.h.b16 %v53
      %v104 = vpack.c.b16 %v102, %v100
      %v105 = vpack.c.b16 %v103, %v101
      %v140 = vunpack.c.l.b16 %v54
      %v141 = vunpack.c.h.b16 %v54
      %v142 = vunpack.c.l.b16 %v55
      %v143 = vunpack.c.h.b16 %v55
      %v144 = vunpack.c.l.b16 %v56
      %v145 = vunpack.c.h.b16 %v56
      %v146 = vunpack.c.l.b16 %v57
      %v147 = vunpack.c.h.b16 %v57
      %v148 = vunpack.c.l.b16 %v58
      %v149 = vunpack.c.h.b16 %v58
      %v150 = vunpack.c.l.b16 %v59
      %v151 = vunpack.c.h.b16 %v59
      %v152 = vunpack.c.l.b16 %v60
      %v153 = vunpack.c.h.b16 %v60
      %v154 = vunpack.c.l.b16 %v61
      %v155 = vunpack.c.h.b16 %v61
      %v156 = vunpack.c.l.b16 %v62
      %v157 = vunpack.c.h.b16 %v62
      %v158 = vunpack.c.l.b16 %v63
      %v159 = vunpack.c.h.b16 %v63
      %v160 = vunpack.c.l.b16 %v64
      %v161 = vunpack.c.h.b16 %v64
      %v162 = vunpack.c.l.b16 %v65
      %v163 = vunpack.c.h.b16 %v65
      %v164 = vunpack.c.l.b16 %v66
      %v165 = vunpack.c.h.b16 %v66
      %v166 = vunpack.c.l.b16 %v67
      %v167 = vunpack.c.h.b16 %v67
      %v168 = vunpack.c.l.b16 %v68
      %v169 = vunpack.c.h.b16 %v68
      %v170 = vunpack.c.l.b16 %v69
      %v171 = vunpack.c.h.b16 %v69
      %v172 = vunpack.c.l.b16 %v70
      %v173 = vunpack.c.h.b16 %v70
      %v174 = vunpack.c.l.b16 %v71
      %v175 = vunpack.c.h.b16 %v71
      %v176 = vunpack.c.l.b16 %v72
      %v177 = vunpack.c.h.b16 %v72
      %v178 = vunpack.c.l.b16 %v73
      %v179 = vunpack.c.h.b16 %v73
      %v180 = vunpack.c.l.b16 %v74
      %v181 = vunpack.c.h.b16 %v74
      %v182 = vunpack.c.l.b16 %v75
      %v183 = vunpack.c.h.b16 %v75
      %v184 = vunpack.c.l.b16 %v76
      %v185 = vunpack.c.h.b16 %v76
      %v186 = vunpack.c.l.b16 %v77
      %v187 = vunpack.c.h.b16 %v77
      %v188 = vunpack.c.l.b16 %v78
      %v189 = vunpack.c.h.b16 %v78
      %v190 = vunpack.c.l.b16 %v79
      %v191 = vunpack.c.h.b16 %v79
      %v192 = vunpack.c.l.b16 %v80
      %v193 = vunpack.c.h.b16 %v80
      %v194 = vunpack.c.l.b16 %v81
      %v195 = vunpack.c.h.b16 %v81
      %v196 = vunpack.c.l.b16 %v82
      %v197 = vunpack.c.h.b16 %v82
      %v198 = vunpack.c.l.b16 %v83
      %v199 = vunpack.c.h.b16 %v83
      %v200 = vunpack.c.l.b16 %v84
      %v201 = vunpack.c.h.b16 %v84
      %v202 = vunpack.c.l.b16 %v85
      %v203 = vunpack.c.h.b16 %v85
      %v204 = vpack.c.b16 %v142, %v140
      %v205 = vpack.c.b16 %v143, %v141
      %v206 = vpack.c.b16 %v146, %v144
      %v207 = vpack.c.b16 %v147, %v145
      %v208 = vpack.c.b16 %v150, %v148
      %v209 = vpack.c.b16 %v151, %v149
      %v210 = vpack.c.b16 %v154, %v152
      %v211 = vpack.c.b16 %v155, %v153
      %v212 = vpack.c.b16 %v158, %v156
      %v213 = vpack.c.b16 %v159, %v157
      %v214 = vpack.c.b16 %v162, %v160
      %v215 = vpack.c.b16 %v163, %v161
      %v216 = vpack.c.b16 %v166, %v164
      %v217 = vpack.c.b16 %v167, %v165
      %v218 = vpack.c.b16 %v170, %v168
      %v219 = vpack.c.b16 %v171, %v169
      %v220 = vpack.c.b16 %v174, %v172
      %v221 = vpack.c.b16 %v175, %v173
      %v222 = vpack.c.b16 %v178, %v176
      %v223 = vpack.c.b16 %v179, %v177
      %v224 = vpack.c.b16 %v182, %v180
      %v225 = vpack.c.b16 %v183, %v181
      %v226 = vpack.c.b16 %v186, %v184
      %v227 = vpack.c.b16 %v187, %v185
      %v228 = vpack.c.b16 %v190, %v188
      %v229 = vpack.c.b16 %v191, %v189
      %v230 = vpack.c.b16 %v194, %v192
      %v231 = vpack.c.b16 %v195, %v193
      %v232 = vpack.c.b16 %v198, %v196
      %v233 = vpack.c.b16 %v199, %v197
      %v234 = vpack.c.b16 %v202, %v200
      %v235 = vpack.c.b16 %v203, %v201
      %268 = vmatprep.subr.bf16.mxu0 %v219
      %269 = vmatpush1.bf16.msra.mxu0 %v218
      %270 = vmatprep.subr.bf16.mxu0 %v217
      %271 = vmatpush1.bf16.msra.mxu0 %v216
      %272 = vmatprep.subr.bf16.mxu0 %v215
      %273 = vmatpush1.bf16.msra.mxu0 %v214
      %274 = vmatprep.subr.bf16.mxu0 %v213
      %275 = vmatpush1.bf16.msra.mxu0 %v212
      %276 = vmatprep.subr.bf16.mxu0 %v211
      %277 = vmatpush1.bf16.msra.mxu0 %v210
      %278 = vmatprep.subr.bf16.mxu0 %v209
      %279 = vmatpush1.bf16.msra.mxu0 %v208
      %280 = vmatprep.subr.bf16.mxu0 %v207
      %281 = vmatpush1.bf16.msra.mxu0 %v206
      %282 = vmatprep.subr.bf16.mxu0 %v205
      %283 = vmatpush1.bf16.msra.mxu0 %v204
      %284 = vmatprep.subr.bf16.mxu0 %v235
      %285 = vmatpush2.bf16.msra.mxu0 %v234
      %286 = vmatprep.subr.bf16.mxu0 %v233
      %287 = vmatpush2.bf16.msra.mxu0 %v232
      %288 = vmatprep.subr.bf16.mxu0 %v231
      %289 = vmatpush2.bf16.msra.mxu0 %v230
      %290 = vmatprep.subr.bf16.mxu0 %v229
      %291 = vmatpush2.bf16.msra.mxu0 %v228
      %292 = vmatprep.subr.bf16.mxu0 %v227
      %293 = vmatpush2.bf16.msra.mxu0 %v226
      %294 = vmatprep.subr.bf16.mxu0 %v225
      %295 = vmatpush2.bf16.msra.mxu0 %v224
      %296 = vmatprep.subr.bf16.mxu0 %v223
      %297 = vmatpush2.bf16.msra.mxu0 %v222
      %298 = vmatprep.subr.bf16.mxu0 %v221
      %299 = vmatpush2.bf16.msra.mxu0 %v220
      %300 = vmatprep.mubr.bf16.mxu0 %v105
      %301 = vmatmul.mubr.bf16.gmra.mxu0 %v104
      %v302 = vpop.f32.mrf.mxu0
      %v303 = vadd.f32 %v91, %v302
      %v304 = vpop.f32.mrf.mxu0
      %v305 = vadd.f32 %v95, %v304
      %v306 = vpop.f32.mrf.mxu0
      %v307 = vadd.f32 %v91, %v306
      %v308 = vpop.f32.mrf.mxu0
      %v309 = vadd.f32 %v95, %v308
      %310 = vdwg.mxu0
      %v311 = vmul.f32 %v303, 0.5
      %v312 = vmul.f32 %v305, 0.5
      %v313 = vmul.f32 %v307, 0.5
      %v314 = vmul.f32 %v309, 0.5
      %v315 = vmul.f32 %v303, 0.70710677
      %v316 = vmul.f32 %v305, 0.70710677
      %v317 = vmul.f32 %v307, 0.70710677
      %v318 = vmul.f32 %v309, 0.70710677
      %v319 = verf.f32.pop %v315
      %v320 = verf.f32.pop %v316
      %v321 = verf.f32.pop %v317
      %v322 = verf.f32.pop %v318
      %v323 = vadd.f32 %v319, 1.0
      %v324 = vadd.f32 %v320, 1.0
      %v325 = vadd.f32 %v321, 1.0
      %v326 = vadd.f32 %v322, 1.0
      %v327 = vmul.f32 %v311, %v323
      %v328 = vmul.f32 %v312, %v324
      %v329 = vmul.f32 %v313, %v325
      %v330 = vmul.f32 %v314, %v326
      %v331 = vpack.c.bf16 %v329, %v327
      %v332 = vpack.c.bf16 %v330, %v328
      %v335 = vunpack.c.l.b16 %v331
      %v336 = vunpack.c.l.b16 %v332
      %v337 = vunpack.c.h.b16 %v331
      %v338 = vunpack.c.h.b16 %v332
      %v339 = vpack.c.b16 %v336, %v335
      %v340 = vpack.c.b16 %v338, %v337
      %343 = vst [vmem:[#allocation2] sm:$0xff] %v339
      %344 = vst [vmem:[#allocation2 + $0x8] sm:$0xff] %v340
    $region33: #{image_adapter.1} parent=1 // pred_fallthru
      _
    %v345 = vld [vmem:[#allocation2] sm:$0xff]
    %v346 = vld [vmem:[#allocation2 + $0x8] sm:$0xff]
    %v347 = vld [vmem:[#allocation5] sm:$0xff]
    %v348 = vld [vmem:[#allocation5 + $0x8] sm:$0xff]
    %v349 = vld [vmem:[#allocation5 + $0x10] sm:$0xff]
    %v350 = vld [vmem:[#allocation5 + $0x18] sm:$0xff]
    %v351 = vld [vmem:[#allocation5 + $0x20] sm:$0xff]
    %v352 = vld [vmem:[#allocation5 + $0x28] sm:$0xff]
    %v353 = vld [vmem:[#allocation5 + $0x30] sm:$0xff]
    %v354 = vld [vmem:[#allocation5 + $0x38] sm:$0xff]
    %v355 = vld [vmem:[#allocation5 + $0x40] sm:$0xff]
    %v356 = vld [vmem:[#allocation5 + $0x48] sm:$0xff]
    %v357 = vld [vmem:[#allocation5 + $0x50] sm:$0xff]
    %v358 = vld [vmem:[#allocation5 + $0x58] sm:$0xff]
    %v359 = vld [vmem:[#allocation5 + $0x60] sm:$0xff]
    %v360 = vld [vmem:[#allocation5 + $0x68] sm:$0xff]
    %v361 = vld [vmem:[#allocation5 + $0x70] sm:$0xff]
    %v362 = vld [vmem:[#allocation5 + $0x78] sm:$0xff]
    %v363 = vld [vmem:[#allocation5 + $0x80] sm:$0xff]
    %v364 = vld [vmem:[#allocation5 + $0x88] sm:$0xff]
    %v365 = vld [vmem:[#allocation5 + $0x90] sm:$0xff]
    %v366 = vld [vmem:[#allocation5 + $0x98] sm:$0xff]
    %v367 = vld [vmem:[#allocation5 + $0xa0] sm:$0xff]
    %v368 = vld [vmem:[#allocation5 + $0xa8] sm:$0xff]
    %v369 = vld [vmem:[#allocation5 + $0xb0] sm:$0xff]
    %v370 = vld [vmem:[#allocation5 + $0xb8] sm:$0xff]
    %v371 = vld [vmem:[#allocation5 + $0xc0] sm:$0xff]
    %v372 = vld [vmem:[#allocation5 + $0xc8] sm:$0xff]
    %v373 = vld [vmem:[#allocation5 + $0xd0] sm:$0xff]
    %v374 = vld [vmem:[#allocation5 + $0xd8] sm:$0xff]
    %v375 = vld [vmem:[#allocation5 + $0xe0] sm:$0xff]
    %v376 = vld [vmem:[#allocation5 + $0xe8] sm:$0xff]
    %v377 = vld [vmem:[#allocation5 + $0xf0] sm:$0xff]
    %v378 = vld [vmem:[#allocation5 + $0xf8] sm:$0xff]
    %v379 = vld [vmem:[%s4] sm:$0x3]
    %v381 = vlaneseq
    %v382 = vshrl.u32 %v381, 7
    %v383 = vsub.s32 0, %v382
    %v384 = vrot.slane %v379, %v383
    %v385 = vlaneseq
    %v386 = vshrl.u32 %v385, 7
    %v387 = vsub.s32 1, %v386
    %v388 = vrot.slane %v379, %v387
    %v393 = vunpack.c.l.b16 %v345
    %v394 = vunpack.c.h.b16 %v345
    %v395 = vunpack.c.l.b16 %v346
    %v396 = vunpack.c.h.b16 %v346
    %v397 = vpack.c.b16 %v395, %v393
    %v398 = vpack.c.b16 %v396, %v394
    %v433 = vunpack.c.l.b16 %v347
    %v434 = vunpack.c.h.b16 %v347
    %v435 = vunpack.c.l.b16 %v348
    %v436 = vunpack.c.h.b16 %v348
    %v437 = vunpack.c.l.b16 %v349
    %v438 = vunpack.c.h.b16 %v349
    %v439 = vunpack.c.l.b16 %v350
    %v440 = vunpack.c.h.b16 %v350
    %v441 = vunpack.c.l.b16 %v351
    %v442 = vunpack.c.h.b16 %v351
    %v443 = vunpack.c.l.b16 %v352
    %v444 = vunpack.c.h.b16 %v352
    %v445 = vunpack.c.l.b16 %v353
    %v446 = vunpack.c.h.b16 %v353
    %v447 = vunpack.c.l.b16 %v354
    %v448 = vunpack.c.h.b16 %v354
    %v449 = vunpack.c.l.b16 %v355
    %v450 = vunpack.c.h.b16 %v355
    %v451 = vunpack.c.l.b16 %v356
    %v452 = vunpack.c.h.b16 %v356
    %v453 = vunpack.c.l.b16 %v357
    %v454 = vunpack.c.h.b16 %v357
    %v455 = vunpack.c.l.b16 %v358
    %v456 = vunpack.c.h.b16 %v358
    %v457 = vunpack.c.l.b16 %v359
    %v458 = vunpack.c.h.b16 %v359
    %v459 = vunpack.c.l.b16 %v360
    %v460 = vunpack.c.h.b16 %v360
    %v461 = vunpack.c.l.b16 %v361
    %v462 = vunpack.c.h.b16 %v361
    %v463 = vunpack.c.l.b16 %v362
    %v464 = vunpack.c.h.b16 %v362
    %v465 = vunpack.c.l.b16 %v363
    %v466 = vunpack.c.h.b16 %v363
    %v467 = vunpack.c.l.b16 %v364
    %v468 = vunpack.c.h.b16 %v364
    %v469 = vunpack.c.l.b16 %v365
    %v470 = vunpack.c.h.b16 %v365
    %v471 = vunpack.c.l.b16 %v366
    %v472 = vunpack.c.h.b16 %v366
    %v473 = vunpack.c.l.b16 %v367
    %v474 = vunpack.c.h.b16 %v367
    %v475 = vunpack.c.l.b16 %v368
    %v476 = vunpack.c.h.b16 %v368
    %v477 = vunpack.c.l.b16 %v369
    %v478 = vunpack.c.h.b16 %v369
    %v479 = vunpack.c.l.b16 %v370
    %v480 = vunpack.c.h.b16 %v370
    %v481 = vunpack.c.l.b16 %v371
    %v482 = vunpack.c.h.b16 %v371
    %v483 = vunpack.c.l.b16 %v372
    %v484 = vunpack.c.h.b16 %v372
    %v485 = vunpack.c.l.b16 %v373
    %v486 = vunpack.c.h.b16 %v373
    %v487 = vunpack.c.l.b16 %v374
    %v488 = vunpack.c.h.b16 %v374
    %v489 = vunpack.c.l.b16 %v375
    %v490 = vunpack.c.h.b16 %v375
    %v491 = vunpack.c.l.b16 %v376
    %v492 = vunpack.c.h.b16 %v376
    %v493 = vunpack.c.l.b16 %v377
    %v494 = vunpack.c.h.b16 %v377
    %v495 = vunpack.c.l.b16 %v378
    %v496 = vunpack.c.h.b16 %v378
    %v497 = vpack.c.b16 %v435, %v433
    %v498 = vpack.c.b16 %v436, %v434
    %v499 = vpack.c.b16 %v439, %v437
    %v500 = vpack.c.b16 %v440, %v438
    %v501 = vpack.c.b16 %v443, %v441
    %v502 = vpack.c.b16 %v444, %v442
    %v503 = vpack.c.b16 %v447, %v445
    %v504 = vpack.c.b16 %v448, %v446
    %v505 = vpack.c.b16 %v451, %v449
    %v506 = vpack.c.b16 %v452, %v450
    %v507 = vpack.c.b16 %v455, %v453
    %v508 = vpack.c.b16 %v456, %v454
    %v509 = vpack.c.b16 %v459, %v457
    %v510 = vpack.c.b16 %v460, %v458
    %v511 = vpack.c.b16 %v463, %v461
    %v512 = vpack.c.b16 %v464, %v462
    %v513 = vpack.c.b16 %v467, %v465
    %v514 = vpack.c.b16 %v468, %v466
    %v515 = vpack.c.b16 %v471, %v469
    %v516 = vpack.c.b16 %v472, %v470
    %v517 = vpack.c.b16 %v475, %v473
    %v518 = vpack.c.b16 %v476, %v474
    %v519 = vpack.c.b16 %v479, %v477
    %v520 = vpack.c.b16 %v480, %v478
    %v521 = vpack.c.b16 %v483, %v481
    %v522 = vpack.c.b16 %v484, %v482
    %v523 = vpack.c.b16 %v487, %v485
    %v524 = vpack.c.b16 %v488, %v486
    %v525 = vpack.c.b16 %v491, %v489
    %v526 = vpack.c.b16 %v492, %v490
    %v527 = vpack.c.b16 %v495, %v493
    %v528 = vpack.c.b16 %v496, %v494
    %561 = vmatprep.subr.bf16.mxu0 %v512
    %562 = vmatpush1.bf16.msra.mxu0 %v511
    %563 = vmatprep.subr.bf16.mxu0 %v510
    %564 = vmatpush1.bf16.msra.mxu0 %v509
    %565 = vmatprep.subr.bf16.mxu0 %v508
    %566 = vmatpush1.bf16.msra.mxu0 %v507
    %567 = vmatprep.subr.bf16.mxu0 %v506
    %568 = vmatpush1.bf16.msra.mxu0 %v505
    %569 = vmatprep.subr.bf16.mxu0 %v504
    %570 = vmatpush1.bf16.msra.mxu0 %v503
    %571 = vmatprep.subr.bf16.mxu0 %v502
    %572 = vmatpush1.bf16.msra.mxu0 %v501
    %573 = vmatprep.subr.bf16.mxu0 %v500
    %574 = vmatpush1.bf16.msra.mxu0 %v499
    %575 = vmatprep.subr.bf16.mxu0 %v498
    %576 = vmatpush1.bf16.msra.mxu0 %v497
    %577 = vmatprep.subr.bf16.mxu0 %v528
    %578 = vmatpush2.bf16.msra.mxu0 %v527
    %579 = vmatprep.subr.bf16.mxu0 %v526
    %580 = vmatpush2.bf16.msra.mxu0 %v525
    %581 = vmatprep.subr.bf16.mxu0 %v524
    %582 = vmatpush2.bf16.msra.mxu0 %v523
    %583 = vmatprep.subr.bf16.mxu0 %v522
    %584 = vmatpush2.bf16.msra.mxu0 %v521
    %585 = vmatprep.subr.bf16.mxu0 %v520
    %586 = vmatpush2.bf16.msra.mxu0 %v519
    %587 = vmatprep.subr.bf16.mxu0 %v518
    %588 = vmatpush2.bf16.msra.mxu0 %v517
    %589 = vmatprep.subr.bf16.mxu0 %v516
    %590 = vmatpush2.bf16.msra.mxu0 %v515
    %591 = vmatprep.subr.bf16.mxu0 %v514
    %592 = vmatpush2.bf16.msra.mxu0 %v513
    %593 = vmatprep.mubr.bf16.mxu0 %v398
    %594 = vmatmul.mubr.bf16.gmra.mxu0 %v397
    %v595 = vpop.f32.mrf.mxu0
    %v596 = vadd.f32 %v384, %v595
    %v597 = vpop.f32.mrf.mxu0
    %v598 = vadd.f32 %v388, %v597
    %v599 = vpop.f32.mrf.mxu0
    %v600 = vadd.f32 %v384, %v599
    %v601 = vpop.f32.mrf.mxu0
    %v602 = vadd.f32 %v388, %v601
    %603 = vdwg.mxu0
    %604 = vst [vmem:[%s5] sm:$0xff] %v596
    %605 = vst [vmem:[%s5 + $0x8] sm:$0xff] %v598
    %606 = vst [vmem:[%s5 + $0x10] sm:$0xff] %v600
    %607 = vst [vmem:[%s5 + $0x18] sm:$0xff] %v602
    // Predicated region
    $region34: #{image_adapter.1} parent=1 // pred_check
      _
    $region35: #{image_adapter.1} parent=1 // pred_check_branch
      %609 = sbr.rel (0) target = $region37
    $region36: #{image_adapter.1} parent=1 // pred_region
      _
    $region37: #{image_adapter.1} parent=1 // pred_fallthru
      _
    // Predicated region
    $region38: #{image_adapter.1} parent=1 // pred_check
      _
    $region39: #{image_adapter.1} parent=1 // pred_check_branch
      %611 = sbr.rel (0) target = $region41
    $region40: #{image_adapter.1} parent=1 // pred_region
      _
    $region41: #{image_adapter.1} parent=1 // pred_fallthru
      _
    %612 = vsyncpa [#allocation4], 1
    %613 = vsyncpa [#allocation6], 1

</llo_original>
